<compile_context>
chip_gen: v7x
topology: tpu7x:2x2x1
jax: 0.10.0
libtpu: 0.0.40
codegen_flags: <defaults>
</compile_context>

<pallas_src>
import functools

import numpy as np
import jax
import jax.numpy as jnp
from jax.experimental import pallas as pl
from jax.experimental.pallas import tpu as pltpu

EPS = 1e-6
LANES = 128
MAX_BLOCK_ROWS = 4096   # 4096 * 128 * 4B = 2 MiB per f32 input per buffer.
SUBLANE_PAD = 32        # row rounding for small arrays: safe for f32/bf16/int8.


def _round_up(a, b):
    return -(-a // b) * b


def _make_kernel(total, block_rows, steps_per_core, weighted):
    """Returns a kernel accumulating sum(sqrt((x-y)^2+eps)[*w]) into o_ref."""
    full_rows, rem = divmod(total, LANES)   # static Python ints

    def kernel(*refs):
        if weighted:
            x_ref, y_ref, w_ref, o_ref = refs
        else:
            x_ref, y_ref, o_ref = refs
            w_ref = None

        i = pl.program_id(1)

        @pl.when(i == 0)
        def _():
            o_ref[...] = jnp.zeros_like(o_ref)

        # Logical (unclamped) block index -> element mask for the tail and for
        # any duplicated block introduced by the per-core split.
        blk = pl.program_id(0) * steps_per_core + i
        row0 = blk * block_rows
        rid = jax.lax.broadcasted_iota(jnp.int32, (block_rows, LANES), 0) + row0
        if rem == 0:
            mask = rid < full_rows
        else:
            lid = jax.lax.broadcasted_iota(jnp.int32, (block_rows, LANES), 1)
            mask = (rid < full_rows) | ((rid == full_rows) & (lid < rem))

        d = x_ref[...].astype(jnp.float32) - y_ref[...].astype(jnp.float32)
        err = jnp.sqrt(d * d + jnp.float32(EPS))
        if weighted:
            err = err * w_ref[...].astype(jnp.float32)
        err = jnp.where(mask, err, jnp.float32(0.0))

        # Full-vreg accumulation: fold the (block_rows, 128) tile into (8, 128)
        # with pure VALU adds; defer the cross-lane reduce to the wrapper.
        o_ref[...] += err.reshape(block_rows // 8, 8, LANES).sum(axis=0)

    return kernel


def l1_charbonnier_loss(x, y, weight=None):
    """mean(sqrt((x - y)^2 + 1e-6) [* weight]) — matches L1_Charbonnier_loss.forward."""
    assert x.shape == y.shape, (x.shape, y.shape)
    total = int(np.prod(x.shape))
    assert total > 0

    rows = -(-total // LANES)
    if rows >= MAX_BLOCK_ROWS:
        padded_rows = rows                      # partial last block is masked in-kernel
        block_rows = MAX_BLOCK_ROWS
    else:
        padded_rows = _round_up(rows, SUBLANE_PAD)
        block_rows = padded_rows                # single block covers everything

    num_blocks = -(-padded_rows // block_rows)
    cores = 2 if num_blocks >= 2 else 1         # leading "parallel" axis -> 2 TCs on v7x
    steps = -(-num_blocks // cores)
    pad = padded_rows * LANES - total           # only nonzero when total % 128 != 0
                                                # (or for tiny arrays); masked in-kernel.

    def to_lane_dense(a):
        flat = jnp.ravel(a)                     # native dtype; no f32 cast here
        if pad:
            flat = jnp.pad(flat, (0, pad))
        return flat.reshape(padded_rows, LANES)

    inputs = [to_lane_dense(x), to_lane_dense(y)]
    weighted = weight is not None
    if weighted:
        # TODO(synk): torch broadcasting of `weight` is not supported; require same shape.
        assert weight.shape == x.shape, (weight.shape, x.shape)
        inputs.append(to_lane_dense(weight))

    def in_idx_map(c, i):
        # Clamp so a duplicated trailing block (when num_blocks % cores != 0)
        # re-reads a valid block; its contribution is masked out in-kernel.
        return (jnp.minimum(c * steps + i, num_blocks - 1), 0)

    block_spec = pl.BlockSpec((block_rows, LANES), in_idx_map)
    in_specs = [block_spec] * len(inputs)

    kernel = _make_kernel(total, block_rows, steps, weighted)

    partials = pl.pallas_call(
        kernel,
        out_shape=jax.ShapeDtypeStruct((8 * cores, LANES), jnp.float32),
        grid_spec=pltpu.PrefetchScalarGridSpec(
            num_scalar_prefetch=0,
            grid=(cores, steps),
            in_specs=in_specs,
            # One (8,128) accumulator block per core; resident across the
            # "arbitrary" reduction axis.
            out_specs=pl.BlockSpec((8, LANES), lambda c, i: (c, 0)),
        ),
        compiler_params=pltpu.CompilerParams(
            dimension_semantics=("parallel", "arbitrary")),
    )(*inputs)

    return jnp.sum(partials) / jnp.float32(total)


if __name__ == "__main__":
    key = jax.random.PRNGKey(0)
    kx, ky, kw = jax.random.split(key, 3)
    shape = (2, 4, 16, 16)
    x = jax.random.normal(kx, shape, dtype=jnp.float32)
    y = jax.random.normal(ky, shape, dtype=jnp.float32)

    # Unweighted path (weight=None, the module default).
    loss = jax.block_until_ready(l1_charbonnier_loss(x, y))
    ref = jnp.mean(jnp.sqrt((x - y) ** 2 + EPS))
    np.testing.assert_allclose(np.asarray(loss), np.asarray(ref),
                               rtol=1e-5, atol=1e-6)

    # Weighted path.
    w = jax.random.uniform(kw, shape, dtype=jnp.float32)
    loss_w = jax.block_until_ready(l1_charbonnier_loss(x, y, w))
    ref_w = jnp.mean(jnp.sqrt((x - y) ** 2 + EPS) * w)
    np.testing.assert_allclose(np.asarray(loss_w), np.asarray(ref_w),
                               rtol=1e-5, atol=1e-6)

    # Odd-sized bf16 inputs: exercises native-dtype DMA + in-kernel tail masking.
    shape2 = (3, 5, 7, 3)   # 315 elements, not a multiple of 128
    xb = jax.random.normal(kx, shape2, dtype=jnp.bfloat16)
    yb = jax.random.normal(ky, shape2, dtype=jnp.bfloat16)
    loss_b = jax.block_until_ready(l1_charbonnier_loss(xb, yb))
    xb32, yb32 = xb.astype(jnp.float32), yb.astype(jnp.float32)
    ref_b = jnp.mean(jnp.sqrt((xb32 - yb32) ** 2 + EPS))
    np.testing.assert_allclose(np.asarray(loss_b), np.asarray(ref_b),
                               rtol=1e-5, atol=1e-6)

    print("KERNEL_OK")
</pallas_src>

<mosaic_0001>
module attributes {stable_mosaic.version = 11 : i64} {
  func.func @kernel(%arg0: i32, %arg1: i32, %arg2: memref<32x128xf32, #tpu.memory_space<vmem>>, %arg3: memref<32x128xf32, #tpu.memory_space<vmem>>, %arg4: memref<8x128xf32, #tpu.memory_space<vmem>>) attributes {dimension_semantics = [#tpu.dimension_semantics<parallel>, #tpu.dimension_semantics<arbitrary>], iteration_bounds = array<i64: 1, 1>, scalar_prefetch = 0 : i64, scratch_operands = 0 : i64, tpu.core_type = #tpu.core_type<tc>, window_params = [{transform_indices = @transform_0, window_bounds = array<i64: 32, 128>}, {transform_indices = @transform_1, window_bounds = array<i64: 32, 128>}, {transform_indices = @transform_2, window_bounds = array<i64: 8, 128>}]} {
    %c0_i32 = arith.constant 0 : i32
    %0 = arith.cmpi eq, %arg1, %c0_i32 : i32
    %1 = arith.extui %0 : i1 to i32
    %c0_i32_0 = arith.constant 0 : i32
    %2 = arith.cmpi ne, %1, %c0_i32_0 : i32
    scf.if %2 {
      %cst_10 = arith.constant 0.000000e+00 : f32
      %25 = vector.broadcast %cst_10 : f32 to vector<8x128xf32>
      %c0_11 = arith.constant 0 : index
      %c0_12 = arith.constant 0 : index
      %26 = vector.load %arg4[%c0_11, %c0_12] : memref<8x128xf32, #tpu.memory_space<vmem>>, vector<8x128xf32>
      tpu.vector_store %arg4[%c0_11, %c0_12], %25 {strides = array<i32>} : memref<8x128xf32, #tpu.memory_space<vmem>>, vector<8x128xf32>,
    } else {
    }
    %c1_i32 = arith.constant 1 : i32
    %3 = arith.muli %arg0, %c1_i32 : i32
    %4 = arith.addi %3, %arg1 : i32
    %c32_i32 = arith.constant 32 : i32
    %5 = arith.muli %4, %c32_i32 : i32
    %6 = tpu.iota {dimensions = array<i32: 0>} : vector<32x128xi32>
    %7 = vector.broadcast %5 : i32 to vector<32x128xi32>
    %8 = arith.addi %6, %7 : vector<32x128xi32>
    %c16_i32 = arith.constant 16 : i32
    %9 = vector.broadcast %c16_i32 : i32 to vector<32x128xi32>
    %10 = arith.cmpi slt, %8, %9 : vector<32x128xi32>
    %c0 = arith.constant 0 : index
    %c0_1 = arith.constant 0 : index
    %11 = vector.load %arg2[%c0, %c0_1] : memref<32x128xf32, #tpu.memory_space<vmem>>, vector<32x128xf32>
    %c0_2 = arith.constant 0 : index
    %c0_3 = arith.constant 0 : index
    %12 = vector.load %arg3[%c0_2, %c0_3] : memref<32x128xf32, #tpu.memory_space<vmem>>, vector<32x128xf32>
    %13 = arith.subf %11, %12 : vector<32x128xf32>
    %14 = arith.mulf %13, %13 : vector<32x128xf32>
    %cst = arith.constant 9.99999997E-7 : f32
    %15 = vector.broadcast %cst : f32 to vector<32x128xf32>
    %16 = arith.addf %14, %15 : vector<32x128xf32>
    %17 = math.sqrt %16 : vector<32x128xf32>
    %cst_4 = arith.constant 0.000000e+00 : f32
    %18 = vector.broadcast %cst_4 : f32 to vector<32x128xf32>
    %19 = arith.select %10, %17, %18 : vector<32x128xi1>, vector<32x128xf32>
    %c0_5 = arith.constant 0 : index
    %c0_6 = arith.constant 0 : index
    %20 = vector.load %arg4[%c0_5, %c0_6] : memref<8x128xf32, #tpu.memory_space<vmem>>, vector<8x128xf32>
    %21 = vector.shape_cast %19 : vector<32x128xf32> to vector<4x8x128xf32>
    %cst_7 = arith.constant dense<0.000000e+00> : vector<8x128xf32>
    %22 = vector.multi_reduction <add>, %21, %cst_7 [0] : vector<4x8x128xf32> to vector<8x128xf32>
    %23 = arith.addf %20, %22 : vector<8x128xf32>
    %c0_8 = arith.constant 0 : index
    %c0_9 = arith.constant 0 : index
    %24 = vector.load %arg4[%c0_8, %c0_9] : memref<8x128xf32, #tpu.memory_space<vmem>>, vector<8x128xf32>
    tpu.vector_store %arg4[%c0_8, %c0_9], %23 {strides = array<i32>} : memref<8x128xf32, #tpu.memory_space<vmem>>, vector<8x128xf32>,
    return
  }
  func.func @transform_0(%arg0: i32, %arg1: i32) -> (i32, i32) {
    %c1_i32 = arith.constant 1 : i32
    %0 = arith.muli %arg0, %c1_i32 : i32
    %1 = arith.addi %0, %arg1 : i32
    %c0_i32 = arith.constant 0 : i32
    %2 = arith.minsi %1, %c0_i32 : i32
    %c0_i32_0 = arith.constant 0 : i32
    %c0_i32_1 = arith.constant 0 : i32
    return %2, %c0_i32_0 : i32, i32
  }
  func.func @transform_1(%arg0: i32, %arg1: i32) -> (i32, i32) {
    %c1_i32 = arith.constant 1 : i32
    %0 = arith.muli %arg0, %c1_i32 : i32
    %1 = arith.addi %0, %arg1 : i32
    %c0_i32 = arith.constant 0 : i32
    %2 = arith.minsi %1, %c0_i32 : i32
    %c0_i32_0 = arith.constant 0 : i32
    %c0_i32_1 = arith.constant 0 : i32
    return %2, %c0_i32_0 : i32, i32
  }
  func.func @transform_2(%arg0: i32, %arg1: i32) -> (i32, i32) {
    %c0_i32 = arith.constant 0 : i32
    %c0_i32_0 = arith.constant 0 : i32
    return %arg0, %c0_i32 : i32, i32
  }
}

</mosaic_0001>

<llo_original>
// kernel: tpu_custom_call.1
$region0: #{tpu_custom_call.1}
  #allocation0 [shape = 'u32[]', space=smem, size = 0x4, offset = 0x4, fixed_abs, tag = 'smem constant byte address 0x4 - core index']
  #allocation1 [shape = 'u32[144,128]{1,0:T(1,128)}', space=vmem, size = 0x12000, scoped, tag = 'internal scratch']
  %s0 = inlined_call_operand.hbm [shape: f32[32,128], index: 0, kind: input, shape index: {}]
  %s1 = inlined_call_operand.hbm [shape: f32[32,128], index: 1, kind: input, shape index: {}]
  %s2 = inlined_call_operand.hbm [shape: f32[8,128], index: 2, kind: output, shape index: {}]
  %s3 = sld [smem:[#allocation0]]
  $region30: #{tpu_custom_call.1} parent=0
    _
  %s5 = ssub.s32 1, %s3
  %s6 = scalar_select 0, %s5, %s3
  $region1: #{tpu_custom_call.1} parent=0
    #allocation2 [shape = 'u8[16384]{0}', space=vmem, size = 0x4000, scoped, tag = 'input window, operand 0, single buffered']
    #allocation3 [shape = 's32[1]{0}', space=sflag, size = 0x4, scoped, tag = 'scoped memory for tpu_custom_call.1']
    #allocation4 [shape = 's32[1]{0}', space=sflag, size = 0x4, scoped, tag = 'scoped memory for tpu_custom_call.1']
    #allocation5 [shape = 'u8[16384]{0}', space=vmem, size = 0x4000, scoped, tag = 'input window, operand 1, single buffered']
    #allocation6 [shape = 's32[1]{0}', space=sflag, size = 0x4, scoped, tag = 'scoped memory for tpu_custom_call.1']
    #allocation7 [shape = 'u8[4096]{0}', space=vmem, size = 0x1000, scoped, tag = 'output window, operand 0, single buffered']
    %7 = vsyncpa [#allocation3], 0
    %8 = vsyncpa [#allocation6], 0
    %9 = vsyncpa [#allocation4], 0
    // Predicated region
    $region2: #{tpu_custom_call.1} parent=1 // pred_check
      _
    $region3: #{tpu_custom_call.1} parent=1 // pred_check_branch
      %11 = sbr.rel (0) target = $region5
    $region4: #{tpu_custom_call.1} parent=1 // pred_region
      %s12 = sadd.s32 0, 0
      %p13 = scmp.lt.s32.totalorder %s12, 0
      %s14 = scalar_select %p13, %s12, 0
      %s15 = smul.u32 4, %s14
      %s17 = ssub.s32 512, 512
      %18 = vsyncadd [#allocation3], %s17
      %s19 = smul.addr %s15, 128
      %s20 = scalar_lea.hbm %s0, %s19
      %s21 = sshll.u32 [#allocation2], 4
      %s22 = int_to_ptr.vmem [resolvable:$true] %s21
      %27 = dma.hbm_to_vmem [thread:$0]  %s20, 512, %s22, [#allocation3], 128, 128, 8
    $region5: #{tpu_custom_call.1} parent=1 // pred_fallthru
      _
    // Predicated region
    $region6: #{tpu_custom_call.1} parent=1 // pred_check
      _
    $region7: #{tpu_custom_call.1} parent=1 // pred_check_branch
      %29 = sbr.rel (0) target = $region9
    $region8: #{tpu_custom_call.1} parent=1 // pred_region
      %s30 = sadd.s32 0, 0
      %p31 = scmp.lt.s32.totalorder %s30, 0
      %s32 = scalar_select %p31, %s30, 0
      %s33 = smul.u32 4, %s32
      %s35 = ssub.s32 512, 512
      %36 = vsyncadd [#allocation6], %s35
      %s37 = smul.addr %s33, 128
      %s38 = scalar_lea.hbm %s1, %s37
      %s39 = sshll.u32 [#allocation5], 4
      %s40 = int_to_ptr.vmem [resolvable:$true] %s39
      %45 = dma.hbm_to_vmem [thread:$0]  %s38, 512, %s40, [#allocation6], 128, 128, 8
    $region9: #{tpu_custom_call.1} parent=1 // pred_fallthru
      _
    // Predicated region
    $region10: #{tpu_custom_call.1} parent=1 // pred_check
      _
    $region11: #{tpu_custom_call.1} parent=1 // pred_check_branch
      %47 = sbr.rel (0) target = $region13
    $region12: #{tpu_custom_call.1} parent=1 // pred_region
      %48 = dma.done [#allocation3], 512
    $region13: #{tpu_custom_call.1} parent=1 // pred_fallthru
      _
    // Predicated region
    $region14: #{tpu_custom_call.1} parent=1 // pred_check
      _
    $region15: #{tpu_custom_call.1} parent=1 // pred_check_branch
      %50 = sbr.rel (0) target = $region17
    $region16: #{tpu_custom_call.1} parent=1 // pred_region
      %51 = dma.done [#allocation6], 512
    $region17: #{tpu_custom_call.1} parent=1 // pred_fallthru
      _
    %s52 = sadd.s32 0, 0
    %p53 = scmp.lt.s32.totalorder %s52, 0
    %s54 = scalar_select %p53, %s52, 0
    %s55 = smul.u32 4, %s54
    %s56 = sadd.s32 0, 0
    %p57 = scmp.lt.s32.totalorder %s56, 0
    %s58 = scalar_select %p57, %s56, 0
    %s59 = smul.u32 4, %s58
    %p60 = scmp.eq.s32.totalorder 0, 0
    // Predicated region
    $region18: #{tpu_custom_call.1} parent=1 // pred_check
      %p61 = pneg %p60
    $region19: #{tpu_custom_call.1} parent=1 // pred_check_branch
      %63 = sbr.rel (%p61) target = $region21
    $region20: #{tpu_custom_call.1} parent=1 // pred_region
      %64 = vst [vmem:[#allocation7] sm:$0xff] 0.0
    $region21: #{tpu_custom_call.1} parent=1 // pred_fallthru
      _
    %s65 = sadd.s32 0, 0
    %s66 = smul.u32 %s65, 32
    %v67 = vlaneseq
    %v68 = vshrl.u32 %v67, 7
    %v69 = vadd.s32 %v68, 8
    %v70 = vadd.s32 %v68, 16
    %v71 = vadd.s32 %v68, 24
    %v72 = vstv %s66
    %v73 = vadd.s32 %v68, %v72
    %v74 = vadd.s32 %v69, %v72
    %v75 = vadd.s32 %v70, %v72
    %v76 = vadd.s32 %v71, %v72
    %vm77 = vcmp.lt.s32.totalorder %v73, 16
    %vm78 = vcmp.lt.s32.totalorder %v74, 16
    %vm79 = vcmp.lt.s32.totalorder %v75, 16
    %vm80 = vcmp.lt.s32.totalorder %v76, 16
    %v81 = vld [vmem:[#allocation2] sm:$0xff]
    %v82 = vld [vmem:[#allocation2 + $0x8] sm:$0xff]
    %v83 = vld [vmem:[#allocation2 + $0x10] sm:$0xff]
    %v84 = vld [vmem:[#allocation2 + $0x18] sm:$0xff]
    %v85 = vld [vmem:[#allocation5] sm:$0xff]
    %v86 = vld [vmem:[#allocation5 + $0x8] sm:$0xff]
    %v87 = vld [vmem:[#allocation5 + $0x10] sm:$0xff]
    %v88 = vld [vmem:[#allocation5 + $0x18] sm:$0xff]
    %v89 = vsub.f32 %v81, %v85
    %v90 = vsub.f32 %v82, %v86
    %v91 = vsub.f32 %v83, %v87
    %v92 = vsub.f32 %v84, %v88
    %v93 = vmul.f32 %v89, %v89
    %v94 = vmul.f32 %v90, %v90
    %v95 = vmul.f32 %v91, %v91
    %v96 = vmul.f32 %v92, %v92
    %v97 = vadd.f32 %v93, 1e-06
    %v98 = vadd.f32 %v94, 1e-06
    %v99 = vadd.f32 %v95, 1e-06
    %v100 = vadd.f32 %v96, 1e-06
    %v101 = vrsqrt.pop %v97
    %v102 = vmul.f32 %v97, %v101
    %vm103 = vcmp.eq.f32.partialorder %v97, inf
    %v104 = vsel %vm103, %v97, %v102
    %vm105 = vcmp.eq.f32.partialorder %v97, 0.0
    %v106 = vand.u32 %v97, 2147483648
    %v107 = vsel %vm105, %v106, %v104
    %v108 = vrsqrt.pop %v98
    %v109 = vmul.f32 %v98, %v108
    %vm110 = vcmp.eq.f32.partialorder %v98, inf
    %v111 = vsel %vm110, %v98, %v109
    %vm112 = vcmp.eq.f32.partialorder %v98, 0.0
    %v113 = vand.u32 %v98, 2147483648
    %v114 = vsel %vm112, %v113, %v111
    %v115 = vrsqrt.pop %v99
    %v116 = vmul.f32 %v99, %v115
    %vm117 = vcmp.eq.f32.partialorder %v99, inf
    %v118 = vsel %vm117, %v99, %v116
    %vm119 = vcmp.eq.f32.partialorder %v99, 0.0
    %v120 = vand.u32 %v99, 2147483648
    %v121 = vsel %vm119, %v120, %v118
    %v122 = vrsqrt.pop %v100
    %v123 = vmul.f32 %v100, %v122
    %vm124 = vcmp.eq.f32.partialorder %v100, inf
    %v125 = vsel %vm124, %v100, %v123
    %vm126 = vcmp.eq.f32.partialorder %v100, 0.0
    %v127 = vand.u32 %v100, 2147483648
    %v128 = vsel %vm126, %v127, %v125
    %v129 = vsel %vm77, %v107, 0.0
    %v130 = vsel %vm78, %v114, 0.0
    %v131 = vsel %vm79, %v121, 0.0
    %v132 = vsel %vm80, %v128, 0.0
    %v133 = vld [vmem:[#allocation7] sm:$0xff]
    %v134 = vadd.f32 %v129, %v130
    %v135 = vadd.f32 %v134, %v131
    %v136 = vadd.f32 %v135, %v132
    %v137 = vadd.f32 %v133, %v136
    %138 = vst [vmem:[#allocation7] sm:$0xff] %v137
    // Predicated region
    $region22: #{tpu_custom_call.1} parent=1 // pred_check
      _
    $region23: #{tpu_custom_call.1} parent=1 // pred_check_branch
      %140 = sbr.rel (0) target = $region25
    $region24: #{tpu_custom_call.1} parent=1 // pred_region
      %s142 = ssub.s32 128, 128
      %143 = vsyncadd [#allocation4], %s142
      %s145 = sshll.u32 [#allocation7], 4
      %s146 = int_to_ptr.vmem [resolvable:$true] %s145
      %148 = dma.vmem_to_hbm [thread:$0]  %s146, 128, %s2, [#allocation4]
    $region25: #{tpu_custom_call.1} parent=1 // pred_fallthru
      _
    // Predicated region
    $region26: #{tpu_custom_call.1} parent=1 // pred_check
      _
    $region27: #{tpu_custom_call.1} parent=1 // pred_check_branch
      %150 = sbr.rel (0) target = $region29
    $region28: #{tpu_custom_call.1} parent=1 // pred_region
      %151 = dma.done [#allocation4], 128
    $region29: #{tpu_custom_call.1} parent=1 // pred_fallthru
      _
    %152 = vsyncpa [#allocation3], 1
    %153 = vsyncpa [#allocation6], 1
    %154 = vsyncpa [#allocation4], 1

</llo_original>
